<compile_context>
chip_gen: v7x
topology: tpu7x:2x2x1
jax: 0.10.0
libtpu: 0.0.40
codegen_flags: <defaults>
</compile_context>

<pallas_src>
import math

import jax
import jax.numpy as jnp
from jax import lax
from jax.experimental import pallas as pl
from jax.experimental.pallas import tpu as pltpu


# ----------------------------- in-kernel helpers -----------------------------

def _layernorm(x, g, b, eps=1e-5):
    # PyTorch nn.LayerNorm: biased variance over last dim, eps inside sqrt.
    mu = jnp.mean(x, axis=-1, keepdims=True)
    var = jnp.mean((x - mu) ** 2, axis=-1, keepdims=True)
    return (x - mu) * lax.rsqrt(var + eps) * g + b


def _gelu(x):
    # nn.GELU() default = exact erf formulation (kept exact to match PyTorch).
    return 0.5 * x * (1.0 + lax.erf(x / math.sqrt(2.0)))


def _round_up(x, m):
    return (x + m - 1) // m * m


# --------------------------------- kernel ------------------------------------

def _ffn_kernel(x_ref, g_ref, b_ref, w1_ref, b1_ref, w2_ref, b2_ref, o_ref):
    x = x_ref[...]                                         # (TR, D) f32
    xn = _layernorm(x, g_ref[...], b_ref[...])             # f32 VPU math
    # MXU matmuls take bf16 operands, accumulate in f32.
    h = jnp.dot(xn.astype(w1_ref.dtype), w1_ref[...],
                preferred_element_type=jnp.float32) + b1_ref[...]
    h = _gelu(h)                                           # f32 VPU/EUP math
    o_ref[...] = jnp.dot(h.astype(w2_ref.dtype), w2_ref[...],
                         preferred_element_type=jnp.float32) + b2_ref[...]


# -------------------------------- wrapper -------------------------------------

def feedforward(x, params, *, row_tile=64):
    """Pallas FeedForward: x (..., dim) -> (..., dim)."""
    orig_shape = x.shape
    dim = orig_shape[-1]
    hidden = params["w1"].shape[1]

    # Fold all leading dims (batch, sequence, ...) into one row axis.
    rows = int(math.prod(orig_shape[:-1]))
    x2 = x.reshape(rows, dim).astype(jnp.float32)

    # Row tiling: >=2 tiles at these sizes so a v7x chip can use both TCs.
    tr = min(row_tile, _round_up(rows, 8))
    rows_p = _round_up(rows, tr)
    if rows_p != rows:
        x2 = jnp.pad(x2, ((0, rows_p - rows), (0, 0)))

    # Weights go to the MXU in bf16 (halves weight DMA bytes too); biases / LN
    # params stay f32 for the VPU epilogue.
    w1 = params["w1"].astype(jnp.bfloat16)
    w2 = params["w2"].astype(jnp.bfloat16)

    out = pl.pallas_call(
        _ffn_kernel,
        out_shape=jax.ShapeDtypeStruct((rows_p, dim), jnp.float32),
        grid=(rows_p // tr,),
        in_specs=[
            pl.BlockSpec((tr, dim), lambda i: (i, 0)),        # x rows
            pl.BlockSpec((1, dim), lambda i: (0, 0)),         # gamma
            pl.BlockSpec((1, dim), lambda i: (0, 0)),         # beta
            pl.BlockSpec((dim, hidden), lambda i: (0, 0)),    # w1 (bf16)
            pl.BlockSpec((1, hidden), lambda i: (0, 0)),      # b1
            pl.BlockSpec((hidden, dim), lambda i: (0, 0)),    # w2 (bf16)
            pl.BlockSpec((1, dim), lambda i: (0, 0)),         # b2
        ],
        out_specs=pl.BlockSpec((tr, dim), lambda i: (i, 0)),
        compiler_params=pltpu.CompilerParams(
            dimension_semantics=("parallel",)),
    )(x2, params["gamma"], params["beta"], w1, params["b1"], w2, params["b2"])

    return out[:rows].reshape(orig_shape)


# ------------------------------ pure-JAX reference -----------------------------

def feedforward_ref(x, params):
    xn = _layernorm(x, params["gamma"], params["beta"])
    h = _gelu(xn @ params["w1"] + params["b1"])
    return h @ params["w2"] + params["b2"]


# ----------------------------------- main ---------------------------------------

if __name__ == "__main__":
    # Small, lane-dense shapes consistent with the module: x is (B, N, dim).
    B, N, dim, hidden = 2, 64, 128, 256

    key = jax.random.PRNGKey(0)
    kx, kg, kb, k1, kb1, k2, kb2 = jax.random.split(key, 7)

    x = jax.random.normal(kx, (B, N, dim), jnp.float32)
    params = {
        "gamma": 1.0 + 0.1 * jax.random.normal(kg, (1, dim), jnp.float32),
        "beta": 0.1 * jax.random.normal(kb, (1, dim), jnp.float32),
        "w1": jax.random.normal(k1, (dim, hidden), jnp.float32) / math.sqrt(dim),
        "b1": 0.01 * jax.random.normal(kb1, (1, hidden), jnp.float32),
        "w2": jax.random.normal(k2, (hidden, dim), jnp.float32) / math.sqrt(hidden),
        "b2": 0.01 * jax.random.normal(kb2, (1, dim), jnp.float32),
    }

    out = feedforward(x, params)
    jax.block_until_ready(out)
    assert out.shape == (B, N, dim), out.shape

    # Tolerance-gated check vs. exact f32 reference (bf16 MXU inputs deviate
    # slightly from PyTorch's all-f32 math, as flagged in the review).
    ref = feedforward_ref(x, params)
    max_err = float(jnp.max(jnp.abs(out - ref)))
    assert max_err < 5e-2, f"max abs error {max_err}"

    print("KERNEL_OK")
</pallas_src>

<mosaic_0001>
module attributes {stable_mosaic.version = 11 : i64} {
  func.func @_ffn_kernel(%arg0: i32, %arg1: memref<64x128xf32, #tpu.memory_space<vmem>>, %arg2: memref<1x128xf32, #tpu.memory_space<vmem>>, %arg3: memref<1x128xf32, #tpu.memory_space<vmem>>, %arg4: memref<128x256xbf16, #tpu.memory_space<vmem>>, %arg5: memref<1x256xf32, #tpu.memory_space<vmem>>, %arg6: memref<256x128xbf16, #tpu.memory_space<vmem>>, %arg7: memref<1x128xf32, #tpu.memory_space<vmem>>, %arg8: memref<64x128xf32, #tpu.memory_space<vmem>>) attributes {dimension_semantics = [#tpu.dimension_semantics<parallel>], iteration_bounds = array<i64: 2>, scalar_prefetch = 0 : i64, scratch_operands = 0 : i64, tpu.core_type = #tpu.core_type<tc>, window_params = [{transform_indices = @transform_0, window_bounds = array<i64: 64, 128>}, {pipeline_mode = #tpu.pipeline_mode<synchronous>, transform_indices = @transform_1, window_bounds = array<i64: 1, 128>}, {pipeline_mode = #tpu.pipeline_mode<synchronous>, transform_indices = @transform_2, window_bounds = array<i64: 1, 128>}, {pipeline_mode = #tpu.pipeline_mode<synchronous>, transform_indices = @transform_3, window_bounds = array<i64: 128, 256>}, {pipeline_mode = #tpu.pipeline_mode<synchronous>, transform_indices = @transform_4, window_bounds = array<i64: 1, 256>}, {pipeline_mode = #tpu.pipeline_mode<synchronous>, transform_indices = @transform_5, window_bounds = array<i64: 256, 128>}, {pipeline_mode = #tpu.pipeline_mode<synchronous>, transform_indices = @transform_6, window_bounds = array<i64: 1, 128>}, {transform_indices = @transform_7, window_bounds = array<i64: 64, 128>}]} {
    %c0 = arith.constant 0 : index
    %c0_0 = arith.constant 0 : index
    %0 = vector.load %arg1[%c0, %c0_0] : memref<64x128xf32, #tpu.memory_space<vmem>>, vector<64x128xf32>
    %c0_1 = arith.constant 0 : index
    %c0_2 = arith.constant 0 : index
    %1 = vector.load %arg2[%c0_1, %c0_2] : memref<1x128xf32, #tpu.memory_space<vmem>>, vector<1x128xf32>
    %c0_3 = arith.constant 0 : index
    %c0_4 = arith.constant 0 : index
    %2 = vector.load %arg3[%c0_3, %c0_4] : memref<1x128xf32, #tpu.memory_space<vmem>>, vector<1x128xf32>
    %cst = arith.constant dense<0.000000e+00> : vector<64xf32>
    %3 = vector.multi_reduction <add>, %0, %cst [1] : vector<64x128xf32> to vector<64xf32>
    %4 = vector.shape_cast %3 : vector<64xf32> to vector<64x1xf32>
    %cst_5 = arith.constant 1.280000e+02 : f32
    %5 = vector.broadcast %cst_5 : f32 to vector<64x1xf32>
    %6 = arith.divf %4, %5 : vector<64x1xf32>
    %7 = vector.broadcast %6 : vector<64x1xf32> to vector<64x128xf32>
    %8 = arith.subf %0, %7 : vector<64x128xf32>
    %9 = arith.mulf %8, %8 : vector<64x128xf32>
    %cst_6 = arith.constant dense<0.000000e+00> : vector<64xf32>
    %10 = vector.multi_reduction <add>, %9, %cst_6 [1] : vector<64x128xf32> to vector<64xf32>
    %11 = vector.shape_cast %10 : vector<64xf32> to vector<64x1xf32>
    %cst_7 = arith.constant 1.280000e+02 : f32
    %12 = vector.broadcast %cst_7 : f32 to vector<64x1xf32>
    %13 = arith.divf %11, %12 : vector<64x1xf32>
    %14 = vector.broadcast %6 : vector<64x1xf32> to vector<64x128xf32>
    %15 = arith.subf %0, %14 : vector<64x128xf32>
    %cst_8 = arith.constant 9.99999974E-6 : f32
    %16 = vector.broadcast %cst_8 : f32 to vector<64x1xf32>
    %17 = arith.addf %13, %16 : vector<64x1xf32>
    %18 = math.rsqrt %17 : vector<64x1xf32>
    %19 = vector.broadcast %18 : vector<64x1xf32> to vector<64x128xf32>
    %20 = arith.mulf %15, %19 : vector<64x128xf32>
    %21 = vector.broadcast %1 : vector<1x128xf32> to vector<64x128xf32>
    %22 = arith.mulf %20, %21 : vector<64x128xf32>
    %23 = vector.broadcast %2 : vector<1x128xf32> to vector<64x128xf32>
    %24 = arith.addf %22, %23 : vector<64x128xf32>
    %25 = arith.truncf %24 : vector<64x128xf32> to vector<64x128xbf16>
    %c0_9 = arith.constant 0 : index
    %c0_10 = arith.constant 0 : index
    %26 = vector.load %arg4[%c0_9, %c0_10] : memref<128x256xbf16, #tpu.memory_space<vmem>>, vector<128x256xbf16>
    %cst_11 = arith.constant dense<0.000000e+00> : vector<64x256xf32>
    %27 = tpu.matmul %25, %26, %cst_11 {dimension_numbers = #tpu.dot_dimension_numbers<[1], [0], [0], [1], [0, 0, 1, 1], [], []>} : vector<64x128xbf16>, vector<128x256xbf16>, vector<64x256xf32> -> vector<64x256xf32>
    %c0_12 = arith.constant 0 : index
    %c0_13 = arith.constant 0 : index
    %28 = vector.load %arg5[%c0_12, %c0_13] : memref<1x256xf32, #tpu.memory_space<vmem>>, vector<1x256xf32>
    %29 = vector.broadcast %28 : vector<1x256xf32> to vector<64x256xf32>
    %30 = arith.addf %27, %29 : vector<64x256xf32>
    %cst_14 = arith.constant 5.000000e-01 : f32
    %31 = vector.broadcast %cst_14 : f32 to vector<64x256xf32>
    %32 = arith.mulf %31, %30 : vector<64x256xf32>
    %cst_15 = arith.constant 1.41421354 : f32
    %33 = vector.broadcast %cst_15 : f32 to vector<64x256xf32>
    %34 = arith.divf %30, %33 : vector<64x256xf32>
    %35 = math.erf %34 : vector<64x256xf32>
    %cst_16 = arith.constant 1.000000e+00 : f32
    %36 = vector.broadcast %cst_16 : f32 to vector<64x256xf32>
    %37 = arith.addf %36, %35 : vector<64x256xf32>
    %38 = arith.mulf %32, %37 : vector<64x256xf32>
    %39 = arith.truncf %38 : vector<64x256xf32> to vector<64x256xbf16>
    %c0_17 = arith.constant 0 : index
    %c0_18 = arith.constant 0 : index
    %40 = vector.load %arg6[%c0_17, %c0_18] : memref<256x128xbf16, #tpu.memory_space<vmem>>, vector<256x128xbf16>
    %cst_19 = arith.constant dense<0.000000e+00> : vector<64x128xf32>
    %41 = tpu.matmul %39, %40, %cst_19 {dimension_numbers = #tpu.dot_dimension_numbers<[1], [0], [0], [1], [0, 0, 1, 1], [], []>} : vector<64x256xbf16>, vector<256x128xbf16>, vector<64x128xf32> -> vector<64x128xf32>
    %c0_20 = arith.constant 0 : index
    %c0_21 = arith.constant 0 : index
    %42 = vector.load %arg7[%c0_20, %c0_21] : memref<1x128xf32, #tpu.memory_space<vmem>>, vector<1x128xf32>
    %43 = vector.broadcast %42 : vector<1x128xf32> to vector<64x128xf32>
    %44 = arith.addf %41, %43 : vector<64x128xf32>
    %c0_22 = arith.constant 0 : index
    %c0_23 = arith.constant 0 : index
    %45 = vector.load %arg8[%c0_22, %c0_23] : memref<64x128xf32, #tpu.memory_space<vmem>>, vector<64x128xf32>
    tpu.vector_store %arg8[%c0_22, %c0_23], %44 {strides = array<i32>} : memref<64x128xf32, #tpu.memory_space<vmem>>, vector<64x128xf32>,
    return
  }
  func.func @transform_0(%arg0: i32) -> (i32, i32) {
    %c0_i32 = arith.constant 0 : i32
    %c0_i32_0 = arith.constant 0 : i32
    return %arg0, %c0_i32 : i32, i32
  }
  func.func @transform_1(%arg0: i32) -> (i32, i32) {
    %c0_i32 = arith.constant 0 : i32
    %c0_i32_0 = arith.constant 0 : i32
    %c0_i32_1 = arith.constant 0 : i32
    return %c0_i32, %c0_i32_0 : i32, i32
  }
  func.func @transform_2(%arg0: i32) -> (i32, i32) {
    %c0_i32 = arith.constant 0 : i32
    %c0_i32_0 = arith.constant 0 : i32
    %c0_i32_1 = arith.constant 0 : i32
    return %c0_i32, %c0_i32_0 : i32, i32
  }
  func.func @transform_3(%arg0: i32) -> (i32, i32) {
    %c0_i32 = arith.constant 0 : i32
    %c0_i32_0 = arith.constant 0 : i32
    %c0_i32_1 = arith.constant 0 : i32
    return %c0_i32, %c0_i32_0 : i32, i32
  }
  func.func @transform_4(%arg0: i32) -> (i32, i32) {
    %c0_i32 = arith.constant 0 : i32
    %c0_i32_0 = arith.constant 0 : i32
    %c0_i32_1 = arith.constant 0 : i32
    return %c0_i32, %c0_i32_0 : i32, i32
  }
  func.func @transform_5(%arg0: i32) -> (i32, i32) {
    %c0_i32 = arith.constant 0 : i32
    %c0_i32_0 = arith.constant 0 : i32
    %c0_i32_1 = arith.constant 0 : i32
    return %c0_i32, %c0_i32_0 : i32, i32
  }
  func.func @transform_6(%arg0: i32) -> (i32, i32) {
    %c0_i32 = arith.constant 0 : i32
    %c0_i32_0 = arith.constant 0 : i32
    %c0_i32_1 = arith.constant 0 : i32
    return %c0_i32, %c0_i32_0 : i32, i32
  }
  func.func @transform_7(%arg0: i32) -> (i32, i32) {
    %c0_i32 = arith.constant 0 : i32
    %c0_i32_0 = arith.constant 0 : i32
    return %arg0, %c0_i32 : i32, i32
  }
}

</mosaic_0001>

<llo_original>
// kernel: tpu_custom_call.1
$region0: #{tpu_custom_call.1}
  #allocation0 [shape = 'u32[]', space=smem, size = 0x4, offset = 0x4, fixed_abs, tag = 'smem constant byte address 0x4 - core index']
  #allocation1 [shape = 'u32[144,128]{1,0:T(1,128)}', space=vmem, size = 0x12000, scoped, tag = 'internal scratch']
  %s0 = inlined_call_operand.hbm [shape: f32[128,128], index: 0, kind: input, shape index: {}]
  %s1 = inlined_call_operand.vmem [shape: f32[1,128], index: 1, kind: input, shape index: {}]
  %s2 = inlined_call_operand.vmem [shape: f32[1,128], index: 2, kind: input, shape index: {}]
  %s3 = inlined_call_operand.hbm [shape: bf16[128,256], index: 3, kind: input, shape index: {}]
  %s4 = inlined_call_operand.vmem [shape: f32[1,256], index: 4, kind: input, shape index: {}]
  %s5 = inlined_call_operand.hbm [shape: bf16[256,128], index: 5, kind: input, shape index: {}]
  %s6 = inlined_call_operand.vmem [shape: f32[1,128], index: 6, kind: input, shape index: {}]
  %s7 = inlined_call_operand.hbm [shape: f32[128,128], index: 7, kind: output, shape index: {}]
  %s8 = sld [smem:[#allocation0]]
  $region73: #{tpu_custom_call.1} parent=0
    _
  %s10 = ssub.s32 1, %s8
  %s11 = scalar_select 0, %s10, %s8
  $region1: #{tpu_custom_call.1} parent=0
    #allocation2 [shape = 'u8[65536]{0}', space=vmem, size = 0x10000, scoped, tag = 'input window, operand 0']
    #allocation3 [shape = 's32[2]{0}', space=sflag, size = 0x8, scoped, tag = 'scoped memory for tpu_custom_call.1']
    #allocation4 [shape = 's32[2]{0}', space=sflag, size = 0x8, scoped, tag = 'scoped memory for tpu_custom_call.1']
    #allocation5 [shape = 'u8[65536]{0}', space=vmem, size = 0x10000, scoped, tag = 'input window, operand 3, single buffered']
    #allocation6 [shape = 's32[1]{0}', space=sflag, size = 0x4, scoped, tag = 'scoped memory for tpu_custom_call.1']
    #allocation7 [shape = 'u8[65536]{0}', space=vmem, size = 0x10000, scoped, tag = 'input window, operand 5, single buffered']
    #allocation8 [shape = 'u8[65536]{0}', space=vmem, size = 0x10000, scoped, tag = 'output window, operand 0']
    %12 = vsyncpa [#allocation3], 0
    %s13 = scalar_lea.sflag [#allocation3], 1
    %14 = vsyncpa %s13, 0
    %15 = vsyncpa [#allocation6], 0
    %16 = vsyncpa [#allocation4], 0
    %s17 = scalar_lea.sflag [#allocation4], 1
    %18 = vsyncpa %s17, 0
    loop: start=0, step=1, limit=4
    $region2: #{tpu_custom_call.1} parent=1 // loop_pre_header
      _
    $region3: #{tpu_custom_call.1} parent=1 // loop_header
      %s20 = sphi 0, %s24
      %p21 = scmp.ge.s32.totalorder %s20, 4
      %s30 = sphi 0, %s32
      %s33 = sphi 0, %s30
      %s34 = sphi 0, %s33
      %s50 = sphi 0, %s34
      %s54 = sphi 0, %s54
      %s56 = sphi 0, %s54
      %s57 = sphi 0, %s56
      %s71 = sphi 0, %s57
      %s75 = sphi 0, %s75
      %s77 = sphi 0, %s75
      %s78 = sphi 0, %s77
      %s92 = sphi 0, %s78
      %s96 = sphi 0, %s96
      %s98 = sphi 0, %s96
      %s99 = sphi 0, %s98
      %s113 = sphi 0, %s99
      %s117 = sphi 0, %s117
      %s119 = sphi 0, %s117
      %s120 = sphi 0, %s119
      %s134 = sphi 0, %s120
      %s138 = sphi 0, %s138
      %s140 = sphi 0, %s138
      %s141 = sphi 0, %s140
      %s155 = sphi 0, %s141
      %s159 = sphi 0, %s159
      %s161 = sphi 0, %s159
      %s162 = sphi 0, %s161
      %s176 = sphi 0, %s162
      %s182 = sphi 0, %s184
      %s185 = sphi 0, %s182
      %s186 = sphi 0, %s185
      %s202 = sphi 0, %s186
    $region4: #{tpu_custom_call.1} parent=1 // loop_header_branch
      %23 = sbr.rel (%p21) target = $region8
    $region5: #{tpu_custom_call.1} parent=1 // loop_body
      %s25 = ssub.s32 %s20, 1
      %s26 = ssub.s32 %s20, 2
      %s27 = sadd.s32 %s20, 1
      %s28 = ssub.s32 %s20, %s27
      %p29 = scmp.eq.s32.totalorder %s28, 0
      %s31 = sadd.s32 %s30, 1
      %s32 = scalar_select %p29, %s30, %s31
      %p35 = pneg %p29
      %p36 = scmp.eq.s32.totalorder %s20, 1
      %p37 = por %p35, %p36
      %p38 = scmp.ne.s32.totalorder %s30, %s33
      %p39 = scmp.eq.s32.totalorder %s20, 0
      %p40 = por %p38, %p39
      %p41 = scmp.ne.s32.totalorder %s30, %s33
      %p42 = scmp.eq.s32.totalorder %s25, 1
      %p43 = por %p41, %p42
      %p44 = scmp.ne.s32.totalorder %s33, %s34
      %p45 = scmp.eq.s32.totalorder %s25, 0
      %p46 = por %p44, %p45
      %p47 = scmp.ne.s32.totalorder %s33, %s34
      %p48 = scmp.eq.s32.totalorder %s26, 1
      %p49 = por %p47, %p48
      %p51 = scmp.ne.s32.totalorder %s34, %s50
      %p52 = scmp.eq.s32.totalorder %s26, 0
      %p53 = por %p51, %p52
      %s55 = sadd.s32 %s54, 1
      %p58 = scmp.eq.s32.totalorder %s20, 1
      %p59 = scmp.ne.s32.totalorder %s54, %s56
      %p60 = scmp.eq.s32.totalorder %s20, 0
      %p61 = por %p59, %p60
      %p62 = scmp.ne.s32.totalorder %s54, %s56
      %p63 = scmp.eq.s32.totalorder %s25, 1
      %p64 = por %p62, %p63
      %p65 = scmp.ne.s32.totalorder %s56, %s57
      %p66 = scmp.eq.s32.totalorder %s25, 0
      %p67 = por %p65, %p66
      %p68 = scmp.ne.s32.totalorder %s56, %s57
      %p69 = scmp.eq.s32.totalorder %s26, 1
      %p70 = por %p68, %p69
      %p72 = scmp.ne.s32.totalorder %s57, %s71
      %p73 = scmp.eq.s32.totalorder %s26, 0
      %p74 = por %p72, %p73
      %s76 = sadd.s32 %s75, 1
      %p79 = scmp.eq.s32.totalorder %s20, 1
      %p80 = scmp.ne.s32.totalorder %s75, %s77
      %p81 = scmp.eq.s32.totalorder %s20, 0
      %p82 = por %p80, %p81
      %p83 = scmp.ne.s32.totalorder %s75, %s77
      %p84 = scmp.eq.s32.totalorder %s25, 1
      %p85 = por %p83, %p84
      %p86 = scmp.ne.s32.totalorder %s77, %s78
      %p87 = scmp.eq.s32.totalorder %s25, 0
      %p88 = por %p86, %p87
      %p89 = scmp.ne.s32.totalorder %s77, %s78
      %p90 = scmp.eq.s32.totalorder %s26, 1
      %p91 = por %p89, %p90
      %p93 = scmp.ne.s32.totalorder %s78, %s92
      %p94 = scmp.eq.s32.totalorder %s26, 0
      %p95 = por %p93, %p94
      %s97 = sadd.s32 %s96, 1
      %p100 = scmp.eq.s32.totalorder %s20, 1
      %p101 = scmp.ne.s32.totalorder %s96, %s98
      %p102 = scmp.eq.s32.totalorder %s20, 0
      %p103 = por %p101, %p102
      %p104 = scmp.ne.s32.totalorder %s96, %s98
      %p105 = scmp.eq.s32.totalorder %s25, 1
      %p106 = por %p104, %p105
      %p107 = scmp.ne.s32.totalorder %s98, %s99
      %p108 = scmp.eq.s32.totalorder %s25, 0
      %p109 = por %p107, %p108
      %p110 = scmp.ne.s32.totalorder %s98, %s99
      %p111 = scmp.eq.s32.totalorder %s26, 1
      %p112 = por %p110, %p111
      %p114 = scmp.ne.s32.totalorder %s99, %s113
      %p115 = scmp.eq.s32.totalorder %s26, 0
      %p116 = por %p114, %p115
      %s118 = sadd.s32 %s117, 1
      %p121 = scmp.eq.s32.totalorder %s20, 1
      %p122 = scmp.ne.s32.totalorder %s117, %s119
      %p123 = scmp.eq.s32.totalorder %s20, 0
      %p124 = por %p122, %p123
      %p125 = scmp.ne.s32.totalorder %s117, %s119
      %p126 = scmp.eq.s32.totalorder %s25, 1
      %p127 = por %p125, %p126
      %p128 = scmp.ne.s32.totalorder %s119, %s120
      %p129 = scmp.eq.s32.totalorder %s25, 0
      %p130 = por %p128, %p129
      %p131 = scmp.ne.s32.totalorder %s119, %s120
      %p132 = scmp.eq.s32.totalorder %s26, 1
      %p133 = por %p131, %p132
      %p135 = scmp.ne.s32.totalorder %s120, %s134
      %p136 = scmp.eq.s32.totalorder %s26, 0
      %p137 = por %p135, %p136
      %s139 = sadd.s32 %s138, 1
      %p142 = scmp.eq.s32.totalorder %s20, 1
      %p143 = scmp.ne.s32.totalorder %s138, %s140
      %p144 = scmp.eq.s32.totalorder %s20, 0
      %p145 = por %p143, %p144
      %p146 = scmp.ne.s32.totalorder %s138, %s140
      %p147 = scmp.eq.s32.totalorder %s25, 1
      %p148 = por %p146, %p147
      %p149 = scmp.ne.s32.totalorder %s140, %s141
      %p150 = scmp.eq.s32.totalorder %s25, 0
      %p151 = por %p149, %p150
      %p152 = scmp.ne.s32.totalorder %s140, %s141
      %p153 = scmp.eq.s32.totalorder %s26, 1
      %p154 = por %p152, %p153
      %p156 = scmp.ne.s32.totalorder %s141, %s155
      %p157 = scmp.eq.s32.totalorder %s26, 0
      %p158 = por %p156, %p157
      %s160 = sadd.s32 %s159, 1
      %p163 = scmp.eq.s32.totalorder %s20, 1
      %p164 = scmp.ne.s32.totalorder %s159, %s161
      %p165 = scmp.eq.s32.totalorder %s20, 0
      %p166 = por %p164, %p165
      %p167 = scmp.ne.s32.totalorder %s159, %s161
      %p168 = scmp.eq.s32.totalorder %s25, 1
      %p169 = por %p167, %p168
      %p170 = scmp.ne.s32.totalorder %s161, %s162
      %p171 = scmp.eq.s32.totalorder %s25, 0
      %p172 = por %p170, %p171
      %p173 = scmp.ne.s32.totalorder %s161, %s162
      %p174 = scmp.eq.s32.totalorder %s26, 1
      %p175 = por %p173, %p174
      %p177 = scmp.ne.s32.totalorder %s162, %s176
      %p178 = scmp.eq.s32.totalorder %s26, 0
      %p179 = por %p177, %p178
      %s180 = ssub.s32 %s20, %s27
      %p181 = scmp.eq.s32.totalorder %s180, 0
      %s183 = sadd.s32 %s182, 1
      %s184 = scalar_select %p181, %s182, %s183
      %p187 = pneg %p181
      %p188 = scmp.eq.s32.totalorder %s20, 1
      %p189 = por %p187, %p188
      %p190 = scmp.ne.s32.totalorder %s182, %s185
      %p191 = scmp.eq.s32.totalorder %s20, 0
      %p192 = por %p190, %p191
      %p193 = scmp.ne.s32.totalorder %s182, %s185
      %p194 = scmp.eq.s32.totalorder %s25, 1
      %p195 = por %p193, %p194
      %p196 = scmp.ne.s32.totalorder %s185, %s186
      %p197 = scmp.eq.s32.totalorder %s25, 0
      %p198 = por %p196, %p197
      %p199 = scmp.ne.s32.totalorder %s185, %s186
      %p200 = scmp.eq.s32.totalorder %s26, 1
      %p201 = por %p199, %p200
      %p203 = scmp.ne.s32.totalorder %s186, %s202
      %p204 = scmp.eq.s32.totalorder %s26, 0
      %p205 = por %p203, %p204
      %p206 = scmp.le.s32.totalorder 1, %s20
      %p207 = scmp.lt.s32.totalorder %s20, 3
      %p208 = pnand %p206, %p207
      %p209 = pneg %p208
      // Predicated region
      $region9: #{tpu_custom_call.1} parent=5 // pred_check
        _
      $region10: #{tpu_custom_call.1} parent=5 // pred_check_branch
        %211 = sbr.rel (%p208) target = $region12
      $region11: #{tpu_custom_call.1} parent=5 // pred_region
        %s212 = ssub.s32 %s20, 1
        // Predicated region
        $region13: #{tpu_custom_call.1} parent=11 // pred_check
          %p213 = pneg %p67
        $region14: #{tpu_custom_call.1} parent=11 // pred_check_branch
          %215 = sbr.rel (%p213) target = $region16
        $region15: #{tpu_custom_call.1} parent=11 // pred_region
          _
        $region16: #{tpu_custom_call.1} parent=11 // pred_fallthru
          _
        // Predicated region
        $region17: #{tpu_custom_call.1} parent=11 // pred_check
          %p216 = pneg %p88
        $region18: #{tpu_custom_call.1} parent=11 // pred_check_branch
          %218 = sbr.rel (%p216) target = $region20
        $region19: #{tpu_custom_call.1} parent=11 // pred_region
          _
        $region20: #{tpu_custom_call.1} parent=11 // pred_fallthru
          _
        // Predicated region
        $region21: #{tpu_custom_call.1} parent=11 // pred_check
          %p219 = pneg %p109
        $region22: #{tpu_custom_call.1} parent=11 // pred_check_branch
          %221 = sbr.rel (%p219) target = $region24
        $region23: #{tpu_custom_call.1} parent=11 // pred_region
          %s223 = ssub.s32 2048, 2048
          %224 = vsyncadd [#allocation6], %s223
          %s225 = sshll.u32 [#allocation5], 4
          %s226 = int_to_ptr.vmem [resolvable:$true] %s225
          %231 = dma.hbm_to_vmem [thread:$0]  %s3, 2048, %s226, [#allocation6], 128, 128, 8
        $region24: #{tpu_custom_call.1} parent=11 // pred_fallthru
          _
        // Predicated region
        $region25: #{tpu_custom_call.1} parent=11 // pred_check
          %p232 = pneg %p130
        $region26: #{tpu_custom_call.1} parent=11 // pred_check_branch
          %234 = sbr.rel (%p232) target = $region28
        $region27: #{tpu_custom_call.1} parent=11 // pred_region
          _
        $region28: #{tpu_custom_call.1} parent=11 // pred_fallthru
          _
        // Predicated region
        $region29: #{tpu_custom_call.1} parent=11 // pred_check
          %p235 = pneg %p151
        $region30: #{tpu_custom_call.1} parent=11 // pred_check_branch
          %237 = sbr.rel (%p235) target = $region32
        $region31: #{tpu_custom_call.1} parent=11 // pred_region
          %s239 = ssub.s32 2048, 2048
          %240 = vsyncadd [#allocation6], %s239
          %s241 = sshll.u32 [#allocation7], 4
          %s242 = int_to_ptr.vmem [resolvable:$true] %s241
          %247 = dma.hbm_to_vmem [thread:$0]  %s5, 2048, %s242, [#allocation6], 64, 64, 4
        $region32: #{tpu_custom_call.1} parent=11 // pred_fallthru
          _
        // Predicated region
        $region33: #{tpu_custom_call.1} parent=11 // pred_check
          %p248 = pneg %p172
        $region34: #{tpu_custom_call.1} parent=11 // pred_check_branch
          %250 = sbr.rel (%p248) target = $region36
        $region35: #{tpu_custom_call.1} parent=11 // pred_region
          _
        $region36: #{tpu_custom_call.1} parent=11 // pred_fallthru
          _
      $region12: #{tpu_custom_call.1} parent=5 // pred_fallthru
        _
      %p251 = scmp.lt.s32.totalorder %s20, 2
      // Predicated region
      $region37: #{tpu_custom_call.1} parent=5 // pred_check
        %p252 = pneg %p251
      $region38: #{tpu_custom_call.1} parent=5 // pred_check_branch
        %254 = sbr.rel (%p252) target = $region40
      $region39: #{tpu_custom_call.1} parent=5 // pred_region
        // Predicated region
        $region41: #{tpu_custom_call.1} parent=39 // pred_check
          %p255 = pneg %p40
        $region42: #{tpu_custom_call.1} parent=39 // pred_check_branch
          %257 = sbr.rel (%p255) target = $region44
        $region43: #{tpu_custom_call.1} parent=39 // pred_region
          %s258 = sand.u32 %s30, 1
          %s259 = scalar_lea.sflag [#allocation3], %s258
          %s260 = sand.u32 %s30, 1
          %s261 = smul.addr %s260, 64
          %s262 = scalar_lea.vmem [#allocation2], %s261
          %s263 = smul.u32 8, %s20
          %s265 = ssub.s32 1024, 1024
          %266 = vsyncadd %s259, %s265
          %s267 = smul.addr %s263, 128
          %s268 = scalar_lea.hbm %s0, %s267
          %s269 = sshll.u32 %s262, 4
          %s270 = int_to_ptr.vmem [resolvable:$true] %s269
          %275 = dma.hbm_to_vmem [thread:$0]  %s268, 1024, %s270, %s259, 128, 128, 8
        $region44: #{tpu_custom_call.1} parent=39 // pred_fallthru
          _
      $region40: #{tpu_custom_call.1} parent=5 // pred_fallthru
        _
      %p276 = scmp.le.s32.totalorder 1, %s20
      %p277 = scmp.lt.s32.totalorder %s20, 3
      %p278 = pnand %p276, %p277
      %p279 = pneg %p278
      // Predicated region
      $region45: #{tpu_custom_call.1} parent=5 // pred_check
        _
      $region46: #{tpu_custom_call.1} parent=5 // pred_check_branch
        %281 = sbr.rel (%p278) target = $region48
      $region47: #{tpu_custom_call.1} parent=5 // pred_region
        %s282 = ssub.s32 %s20, 1
        %s283 = sand.u32 %s33, 1
        %s284 = scalar_lea.sflag [#allocation3], %s283
        %s285 = sand.u32 %s33, 1
        %s286 = smul.addr %s285, 64
        %s287 = scalar_lea.vmem [#allocation2], %s286
        // Predicated region
        $region49: #{tpu_custom_call.1} parent=47 // pred_check
          %p288 = pneg %p46
        $region50: #{tpu_custom_call.1} parent=47 // pred_check_branch
          %290 = sbr.rel (%p288) target = $region52
        $region51: #{tpu_custom_call.1} parent=47 // pred_region
          %291 = dma.done %s284, 1024
        $region52: #{tpu_custom_call.1} parent=47 // pred_fallthru
          _
        // Predicated region
        $region53: #{tpu_custom_call.1} parent=47 // pred_check
          %p292 = pneg %p109
        $region54: #{tpu_custom_call.1} parent=47 // pred_check_branch
          %294 = sbr.rel (%p292) target = $region56
        $region55: #{tpu_custom_call.1} parent=47 // pred_region
          %295 = dma.done [#allocation6], 2048
        $region56: #{tpu_custom_call.1} parent=47 // pred_fallthru
          _
        // Predicated region
        $region57: #{tpu_custom_call.1} parent=47 // pred_check
          %p296 = pneg %p151
        $region58: #{tpu_custom_call.1} parent=47 // pred_check_branch
          %298 = sbr.rel (%p296) target = $region60
        $region59: #{tpu_custom_call.1} parent=47 // pred_region
          %299 = dma.done [#allocation6], 2048
        $region60: #{tpu_custom_call.1} parent=47 // pred_fallthru
          _
        %s300 = sand.u32 %s33, 1
        %s301 = scalar_lea.sflag [#allocation3], %s300
        %s302 = sand.u32 %s33, 1
        %s303 = smul.addr %s302, 64
        %s304 = scalar_lea.vmem [#allocation2], %s303
        %p305 = pneg %p46
        %p306 = pneg %p43
        %p307 = pneg %p67
        %p308 = pneg %p64
        %p309 = pneg %p88
        %p310 = pneg %p85
        %p311 = pneg %p109
        %p312 = pneg %p106
        %p313 = pneg %p130
        %p314 = pneg %p127
        %p315 = pneg %p151
        %p316 = pneg %p148
        %p317 = pneg %p172
        %p318 = pneg %p169
        %p319 = pneg %p198
        %p320 = pneg %p195
        %s321 = sand.u32 %s185, 1
        %s322 = scalar_lea.sflag [#allocation4], %s321
        %s323 = sand.u32 %s185, 1
        %s324 = smul.addr %s323, 64
        %s325 = scalar_lea.vmem [#allocation8], %s324
        %s326 = smul.u32 8, %s25
        %s327 = smul.u32 8, %s25
        %v329 = vld [vmem:[%s287] sm:$0xff]
        %v330 = vld [vmem:[%s287 + $0x8] sm:$0xff]
        %v331 = vld [vmem:[%s287 + $0x10] sm:$0xff]
        %v332 = vld [vmem:[%s287 + $0x18] sm:$0xff]
        %v333 = vld [vmem:[%s287 + $0x20] sm:$0xff]
        %v334 = vld [vmem:[%s287 + $0x28] sm:$0xff]
        %v335 = vld [vmem:[%s287 + $0x30] sm:$0xff]
        %v336 = vld [vmem:[%s287 + $0x38] sm:$0xff]
        %v337 = vld [vmem:[%s1] sm:$0x1]
        %v338 = vld [vmem:[%s2] sm:$0x1]
        %339 = vadd.xlane.f32.xlu0 %v329
        %v340 = vpop.xlane.xlu0 %339
        %341 = vadd.xlane.f32.xlu0 %v330
        %v342 = vpop.xlane.xlu0 %341
        %343 = vadd.xlane.f32.xlu0 %v331
        %v344 = vpop.xlane.xlu0 %343
        %345 = vadd.xlane.f32.xlu0 %v332
        %v346 = vpop.xlane.xlu0 %345
        %347 = vadd.xlane.f32.xlu0 %v333
        %v348 = vpop.xlane.xlu0 %347
        %349 = vadd.xlane.f32.xlu0 %v334
        %v350 = vpop.xlane.xlu0 %349
        %351 = vadd.xlane.f32.xlu0 %v335
        %v352 = vpop.xlane.xlu0 %351
        %353 = vadd.xlane.f32.xlu0 %v336
        %v354 = vpop.xlane.xlu0 %353
        %v355 = vrcp.pop 128.0
        %v356 = vmul.f32 %v340, %v355
        %v357 = vmul.f32 %v342, %v355
        %v358 = vmul.f32 %v344, %v355
        %v359 = vmul.f32 %v346, %v355
        %v360 = vmul.f32 %v348, %v355
        %v361 = vmul.f32 %v350, %v355
        %v362 = vmul.f32 %v352, %v355
        %v363 = vmul.f32 %v354, %v355
        %v364 = vsub.f32 %v329, %v356
        %v365 = vsub.f32 %v330, %v357
        %v366 = vsub.f32 %v331, %v358
        %v367 = vsub.f32 %v332, %v359
        %v368 = vsub.f32 %v333, %v360
        %v369 = vsub.f32 %v334, %v361
        %v370 = vsub.f32 %v335, %v362
        %v371 = vsub.f32 %v336, %v363
        %v372 = vmul.f32 %v364, %v364
        %v373 = vmul.f32 %v365, %v365
        %v374 = vmul.f32 %v366, %v366
        %v375 = vmul.f32 %v367, %v367
        %v376 = vmul.f32 %v368, %v368
        %v377 = vmul.f32 %v369, %v369
        %v378 = vmul.f32 %v370, %v370
        %v379 = vmul.f32 %v371, %v371
        %380 = vadd.xlane.f32.xlu0 %v372
        %v381 = vpop.xlane.xlu0 %380
        %382 = vadd.xlane.f32.xlu0 %v373
        %v383 = vpop.xlane.xlu0 %382
        %384 = vadd.xlane.f32.xlu0 %v374
        %v385 = vpop.xlane.xlu0 %384
        %386 = vadd.xlane.f32.xlu0 %v375
        %v387 = vpop.xlane.xlu0 %386
        %388 = vadd.xlane.f32.xlu0 %v376
        %v389 = vpop.xlane.xlu0 %388
        %390 = vadd.xlane.f32.xlu0 %v377
        %v391 = vpop.xlane.xlu0 %390
        %392 = vadd.xlane.f32.xlu0 %v378
        %v393 = vpop.xlane.xlu0 %392
        %394 = vadd.xlane.f32.xlu0 %v379
        %v395 = vpop.xlane.xlu0 %394
        %v396 = vmul.f32 %v381, %v355
        %v397 = vmul.f32 %v383, %v355
        %v398 = vmul.f32 %v385, %v355
        %v399 = vmul.f32 %v387, %v355
        %v400 = vmul.f32 %v389, %v355
        %v401 = vmul.f32 %v391, %v355
        %v402 = vmul.f32 %v393, %v355
        %v403 = vmul.f32 %v395, %v355
        %v404 = vadd.f32 %v396, 1e-05
        %v405 = vadd.f32 %v397, 1e-05
        %v406 = vadd.f32 %v398, 1e-05
        %v407 = vadd.f32 %v399, 1e-05
        %v408 = vadd.f32 %v400, 1e-05
        %v409 = vadd.f32 %v401, 1e-05
        %v410 = vadd.f32 %v402, 1e-05
        %v411 = vadd.f32 %v403, 1e-05
        %v412 = vrsqrt.pop %v404
        %v413 = vrsqrt.pop %v405
        %v414 = vrsqrt.pop %v406
        %v415 = vrsqrt.pop %v407
        %v416 = vrsqrt.pop %v408
        %v417 = vrsqrt.pop %v409
        %v418 = vrsqrt.pop %v410
        %v419 = vrsqrt.pop %v411
        %v420 = vmul.f32 %v364, %v412
        %v421 = vmul.f32 %v365, %v413
        %v422 = vmul.f32 %v366, %v414
        %v423 = vmul.f32 %v367, %v415
        %v424 = vmul.f32 %v368, %v416
        %v425 = vmul.f32 %v369, %v417
        %v426 = vmul.f32 %v370, %v418
        %v427 = vmul.f32 %v371, %v419
        %v429 = vlaneseq
        %v430 = vshrl.u32 %v429, 7
        %v431 = vsub.s32 0, %v430
        %v432 = vrot.slane %v337, %v431
        %v434 = vmul.f32 %v420, %v432
        %v435 = vmul.f32 %v421, %v432
        %v436 = vmul.f32 %v422, %v432
        %v437 = vmul.f32 %v423, %v432
        %v438 = vmul.f32 %v424, %v432
        %v439 = vmul.f32 %v425, %v432
        %v440 = vmul.f32 %v426, %v432
        %v441 = vmul.f32 %v427, %v432
        %v443 = vlaneseq
        %v444 = vshrl.u32 %v443, 7
        %v445 = vsub.s32 0, %v444
        %v446 = vrot.slane %v338, %v445
        %v448 = vadd.f32 %v434, %v446
        %v449 = vadd.f32 %v435, %v446
        %v450 = vadd.f32 %v436, %v446
        %v451 = vadd.f32 %v437, %v446
        %v452 = vadd.f32 %v438, %v446
        %v453 = vadd.f32 %v439, %v446
        %v454 = vadd.f32 %v440, %v446
        %v455 = vadd.f32 %v441, %v446
        %v456 = vpack.c.bf16 %v449, %v448
        %v457 = vpack.c.bf16 %v451, %v450
        %v458 = vpack.c.bf16 %v453, %v452
        %v459 = vpack.c.bf16 %v455, %v454
        %v460 = vld [vmem:[#allocation5] sm:$0xff]
        %v461 = vld [vmem:[#allocation5 + $0x8] sm:$0xff]
        %v462 = vld [vmem:[#allocation5 + $0x10] sm:$0xff]
        %v463 = vld [vmem:[#allocation5 + $0x18] sm:$0xff]
        %v464 = vld [vmem:[#allocation5 + $0x20] sm:$0xff]
        %v465 = vld [vmem:[#allocation5 + $0x28] sm:$0xff]
        %v466 = vld [vmem:[#allocation5 + $0x30] sm:$0xff]
        %v467 = vld [vmem:[#allocation5 + $0x38] sm:$0xff]
        %v468 = vld [vmem:[#allocation5 + $0x40] sm:$0xff]
        %v469 = vld [vmem:[#allocation5 + $0x48] sm:$0xff]
        %v470 = vld [vmem:[#allocation5 + $0x50] sm:$0xff]
        %v471 = vld [vmem:[#allocation5 + $0x58] sm:$0xff]
        %v472 = vld [vmem:[#allocation5 + $0x60] sm:$0xff]
        %v473 = vld [vmem:[#allocation5 + $0x68] sm:$0xff]
        %v474 = vld [vmem:[#allocation5 + $0x70] sm:$0xff]
        %v475 = vld [vmem:[#allocation5 + $0x78] sm:$0xff]
        %v476 = vld [vmem:[%s4] sm:$0x3]
        %v478 = vlaneseq
        %v479 = vshrl.u32 %v478, 7
        %v480 = vsub.s32 0, %v479
        %v481 = vrot.slane %v476, %v480
        %v482 = vlaneseq
        %v483 = vshrl.u32 %v482, 7
        %v484 = vsub.s32 1, %v483
        %v485 = vrot.slane %v476, %v484
        %v504 = vunpack.c.l.b16 %v460
        %v505 = vunpack.c.h.b16 %v460
        %v506 = vunpack.c.l.b16 %v461
        %v507 = vunpack.c.h.b16 %v461
        %v508 = vunpack.c.l.b16 %v462
        %v509 = vunpack.c.h.b16 %v462
        %v510 = vunpack.c.l.b16 %v463
        %v511 = vunpack.c.h.b16 %v463
        %v512 = vunpack.c.l.b16 %v464
        %v513 = vunpack.c.h.b16 %v464
        %v514 = vunpack.c.l.b16 %v465
        %v515 = vunpack.c.h.b16 %v465
        %v516 = vunpack.c.l.b16 %v466
        %v517 = vunpack.c.h.b16 %v466
        %v518 = vunpack.c.l.b16 %v467
        %v519 = vunpack.c.h.b16 %v467
        %v520 = vunpack.c.l.b16 %v468
        %v521 = vunpack.c.h.b16 %v468
        %v522 = vunpack.c.l.b16 %v469
        %v523 = vunpack.c.h.b16 %v469
        %v524 = vunpack.c.l.b16 %v470
        %v525 = vunpack.c.h.b16 %v470
        %v526 = vunpack.c.l.b16 %v471
        %v527 = vunpack.c.h.b16 %v471
        %v528 = vunpack.c.l.b16 %v472
        %v529 = vunpack.c.h.b16 %v472
        %v530 = vunpack.c.l.b16 %v473
        %v531 = vunpack.c.h.b16 %v473
        %v532 = vunpack.c.l.b16 %v474
        %v533 = vunpack.c.h.b16 %v474
        %v534 = vunpack.c.l.b16 %v475
        %v535 = vunpack.c.h.b16 %v475
        %v536 = vpack.c.b16 %v506, %v504
        %v537 = vpack.c.b16 %v507, %v505
        %v538 = vpack.c.b16 %v510, %v508
        %v539 = vpack.c.b16 %v511, %v509
        %v540 = vpack.c.b16 %v514, %v512
        %v541 = vpack.c.b16 %v515, %v513
        %v542 = vpack.c.b16 %v518, %v516
        %v543 = vpack.c.b16 %v519, %v517
        %v544 = vpack.c.b16 %v522, %v520
        %v545 = vpack.c.b16 %v523, %v521
        %v546 = vpack.c.b16 %v526, %v524
        %v547 = vpack.c.b16 %v527, %v525
        %v548 = vpack.c.b16 %v530, %v528
        %v549 = vpack.c.b16 %v531, %v529
        %v550 = vpack.c.b16 %v534, %v532
        %v551 = vpack.c.b16 %v535, %v533
        %568 = vmatprep.subr.bf16.mxu0 %v537
        %569 = vmatpush1.bf16.msra.mxu0 %v536
        %570 = vmatprep.subr.bf16.mxu0 %v539
        %571 = vmatpush1.bf16.msra.mxu0 %v538
        %572 = vmatprep.subr.bf16.mxu0 %v541
        %573 = vmatpush1.bf16.msra.mxu0 %v540
        %574 = vmatprep.subr.bf16.mxu0 %v543
        %575 = vmatpush1.bf16.msra.mxu0 %v542
        %576 = vmatprep.subr.bf16.mxu0 %v545
        %577 = vmatpush1.bf16.msra.mxu0 %v544
        %578 = vmatprep.subr.bf16.mxu0 %v547
        %579 = vmatpush1.bf16.msra.mxu0 %v546
        %580 = vmatprep.subr.bf16.mxu0 %v549
        %581 = vmatpush1.bf16.msra.mxu0 %v548
        %582 = vmatprep.subr.bf16.mxu0 %v551
        %583 = vmatpush1.bf16.msra.mxu0 %v550
        %584 = vmatprep.subr.bf16.mxu0 0
        %585 = vmatpush1.bf16.msra.mxu0 0
        %586 = vmatprep.subr.bf16.mxu0 0
        %587 = vmatpush1.bf16.msra.mxu0 0
        %588 = vmatprep.subr.bf16.mxu0 0
        %589 = vmatpush1.bf16.msra.mxu0 0
        %590 = vmatprep.subr.bf16.mxu0 0
        %591 = vmatpush1.bf16.msra.mxu0 0
        %592 = vmatprep.subr.bf16.mxu0 0
        %593 = vmatpush1.bf16.msra.mxu0 0
        %594 = vmatprep.subr.bf16.mxu0 0
        %595 = vmatpush1.bf16.msra.mxu0 0
        %596 = vmatprep.subr.bf16.mxu0 0
        %597 = vmatpush1.bf16.msra.mxu0 0
        %598 = vmatprep.subr.bf16.mxu0 0
        %599 = vmatpush1.bf16.msra.mxu0 0
        %600 = vmatprep.mubr.bf16.mxu0 0
        %601 = vmatmul.mubr.bf16.gmra.mrb[0].mxu0 %v456
        %v602 = vpop.f32.mrb[0].mxu0
        %v603 = vadd.f32 %v481, %v602
        %v604 = vpop.f32.mrb[0].mxu0
        %v605 = vadd.f32 %v485, %v604
        %v606 = vpop.f32.mrb[0].mxu0
        %v607 = vadd.f32 %v481, %v606
        %v608 = vpop.f32.mrb[0].mxu0
        %v609 = vadd.f32 %v485, %v608
        %610 = vmatprep.mubr.bf16.mxu0 0
        %611 = vmatmul.mubr.bf16.gmra.mrb[0].mxu0 %v457
        %v612 = vpop.f32.mrb[0].mxu0
        %v613 = vadd.f32 %v481, %v612
        %v614 = vpop.f32.mrb[0].mxu0
        %v615 = vadd.f32 %v485, %v614
        %v616 = vpop.f32.mrb[0].mxu0
        %v617 = vadd.f32 %v481, %v616
        %v618 = vpop.f32.mrb[0].mxu0
        %v619 = vadd.f32 %v485, %v618
        %620 = vmatprep.mubr.bf16.mxu0 0
        %621 = vmatmul.mubr.bf16.gmra.mrb[0].mxu0 %v458
        %v622 = vpop.f32.mrb[0].mxu0
        %v623 = vadd.f32 %v481, %v622
        %v624 = vpop.f32.mrb[0].mxu0
        %v625 = vadd.f32 %v485, %v624
        %v626 = vpop.f32.mrb[0].mxu0
        %v627 = vadd.f32 %v481, %v626
        %v628 = vpop.f32.mrb[0].mxu0
        %v629 = vadd.f32 %v485, %v628
        %630 = vmatprep.mubr.bf16.mxu0 0
        %631 = vmatmul.mubr.bf16.gmra.mrb[0].mxu0 %v459
        %v632 = vpop.f32.mrb[0].mxu0
        %v633 = vadd.f32 %v481, %v632
        %v634 = vpop.f32.mrb[0].mxu0
        %v635 = vadd.f32 %v485, %v634
        %v636 = vpop.f32.mrb[0].mxu0
        %v637 = vadd.f32 %v481, %v636
        %v638 = vpop.f32.mrb[0].mxu0
        %v639 = vadd.f32 %v485, %v638
        %640 = vdwg.mxu0
        %v641 = vmul.f32 %v603, 0.5
        %v642 = vmul.f32 %v605, 0.5
        %v643 = vmul.f32 %v607, 0.5
        %v644 = vmul.f32 %v609, 0.5
        %v645 = vmul.f32 %v613, 0.5
        %v646 = vmul.f32 %v615, 0.5
        %v647 = vmul.f32 %v617, 0.5
        %v648 = vmul.f32 %v619, 0.5
        %v649 = vmul.f32 %v623, 0.5
        %v650 = vmul.f32 %v625, 0.5
        %v651 = vmul.f32 %v627, 0.5
        %v652 = vmul.f32 %v629, 0.5
        %v653 = vmul.f32 %v633, 0.5
        %v654 = vmul.f32 %v635, 0.5
        %v655 = vmul.f32 %v637, 0.5
        %v656 = vmul.f32 %v639, 0.5
        %v657 = vrcp.pop 1.4142135
        %v658 = vmul.f32 %v603, %v657
        %v659 = vmul.f32 %v605, %v657
        %v660 = vmul.f32 %v607, %v657
        %v661 = vmul.f32 %v609, %v657
        %v662 = vmul.f32 %v613, %v657
        %v663 = vmul.f32 %v615, %v657
        %v664 = vmul.f32 %v617, %v657
        %v665 = vmul.f32 %v619, %v657
        %v666 = vmul.f32 %v623, %v657
        %v667 = vmul.f32 %v625, %v657
        %v668 = vmul.f32 %v627, %v657
        %v669 = vmul.f32 %v629, %v657
        %v670 = vmul.f32 %v633, %v657
        %v671 = vmul.f32 %v635, %v657
        %v672 = vmul.f32 %v637, %v657
        %v673 = vmul.f32 %v639, %v657
        %v674 = verf.f32.pop %v658
        %v675 = verf.f32.pop %v659
        %v676 = verf.f32.pop %v660
        %v677 = verf.f32.pop %v661
        %v678 = verf.f32.pop %v662
        %v679 = verf.f32.pop %v663
        %v680 = verf.f32.pop %v664
        %v681 = verf.f32.pop %v665
        %v682 = verf.f32.pop %v666
        %v683 = verf.f32.pop %v667
        %v684 = verf.f32.pop %v668
        %v685 = verf.f32.pop %v669
        %v686 = verf.f32.pop %v670
        %v687 = verf.f32.pop %v671
        %v688 = verf.f32.pop %v672
        %v689 = verf.f32.pop %v673
        %v690 = vadd.f32 %v674, 1.0
        %v691 = vadd.f32 %v675, 1.0
        %v692 = vadd.f32 %v676, 1.0
        %v693 = vadd.f32 %v677, 1.0
        %v694 = vadd.f32 %v678, 1.0
        %v695 = vadd.f32 %v679, 1.0
        %v696 = vadd.f32 %v680, 1.0
        %v697 = vadd.f32 %v681, 1.0
        %v698 = vadd.f32 %v682, 1.0
        %v699 = vadd.f32 %v683, 1.0
        %v700 = vadd.f32 %v684, 1.0
        %v701 = vadd.f32 %v685, 1.0
        %v702 = vadd.f32 %v686, 1.0
        %v703 = vadd.f32 %v687, 1.0
        %v704 = vadd.f32 %v688, 1.0
        %v705 = vadd.f32 %v689, 1.0
        %v706 = vmul.f32 %v641, %v690
        %v707 = vmul.f32 %v642, %v691
        %v708 = vmul.f32 %v643, %v692
        %v709 = vmul.f32 %v644, %v693
        %v710 = vmul.f32 %v645, %v694
        %v711 = vmul.f32 %v646, %v695
        %v712 = vmul.f32 %v647, %v696
        %v713 = vmul.f32 %v648, %v697
        %v714 = vmul.f32 %v649, %v698
        %v715 = vmul.f32 %v650, %v699
        %v716 = vmul.f32 %v651, %v700
        %v717 = vmul.f32 %v652, %v701
        %v718 = vmul.f32 %v653, %v702
        %v719 = vmul.f32 %v654, %v703
        %v720 = vmul.f32 %v655, %v704
        %v721 = vmul.f32 %v656, %v705
        %v722 = vpack.c.bf16 %v708, %v706
        %v723 = vpack.c.bf16 %v709, %v707
        %v724 = vpack.c.bf16 %v712, %v710
        %v725 = vpack.c.bf16 %v713, %v711
        %v726 = vpack.c.bf16 %v716, %v714
        %v727 = vpack.c.bf16 %v717, %v715
        %v728 = vpack.c.bf16 %v720, %v718
        %v729 = vpack.c.bf16 %v721, %v719
        %v730 = vld [vmem:[#allocation7] sm:$0xf]
        %v731 = vld [vmem:[#allocation7 + $0x4] sm:$0xf]
        %v732 = vld [vmem:[#allocation7 + $0x8] sm:$0xf]
        %v733 = vld [vmem:[#allocation7 + $0xc] sm:$0xf]
        %v734 = vld [vmem:[#allocation7 + $0x10] sm:$0xf]
        %v735 = vld [vmem:[#allocation7 + $0x14] sm:$0xf]
        %v736 = vld [vmem:[#allocation7 + $0x18] sm:$0xf]
        %v737 = vld [vmem:[#allocation7 + $0x1c] sm:$0xf]
        %v738 = vld [vmem:[#allocation7 + $0x20] sm:$0xf]
        %v739 = vld [vmem:[#allocation7 + $0x24] sm:$0xf]
        %v740 = vld [vmem:[#allocation7 + $0x28] sm:$0xf]
        %v741 = vld [vmem:[#allocation7 + $0x2c] sm:$0xf]
        %v742 = vld [vmem:[#allocation7 + $0x30] sm:$0xf]
        %v743 = vld [vmem:[#allocation7 + $0x34] sm:$0xf]
        %v744 = vld [vmem:[#allocation7 + $0x38] sm:$0xf]
        %v745 = vld [vmem:[#allocation7 + $0x3c] sm:$0xf]
        %v746 = vld [vmem:[#allocation7 + $0x40] sm:$0xf]
        %v747 = vld [vmem:[#allocation7 + $0x44] sm:$0xf]
        %v748 = vld [vmem:[#allocation7 + $0x48] sm:$0xf]
        %v749 = vld [vmem:[#allocation7 + $0x4c] sm:$0xf]
        %v750 = vld [vmem:[#allocation7 + $0x50] sm:$0xf]
        %v751 = vld [vmem:[#allocation7 + $0x54] sm:$0xf]
        %v752 = vld [vmem:[#allocation7 + $0x58] sm:$0xf]
        %v753 = vld [vmem:[#allocation7 + $0x5c] sm:$0xf]
        %v754 = vld [vmem:[#allocation7 + $0x60] sm:$0xf]
        %v755 = vld [vmem:[#allocation7 + $0x64] sm:$0xf]
        %v756 = vld [vmem:[#allocation7 + $0x68] sm:$0xf]
        %v757 = vld [vmem:[#allocation7 + $0x6c] sm:$0xf]
        %v758 = vld [vmem:[#allocation7 + $0x70] sm:$0xf]
        %v759 = vld [vmem:[#allocation7 + $0x74] sm:$0xf]
        %v760 = vld [vmem:[#allocation7 + $0x78] sm:$0xf]
        %v761 = vld [vmem:[#allocation7 + $0x7c] sm:$0xf]
        %v762 = vld [vmem:[%s6] sm:$0x1]
        %v764 = vlaneseq
        %v765 = vshrl.u32 %v764, 7
        %v766 = vsub.s32 0, %v765
        %v767 = vrot.slane %v762, %v766
        %v801 = vunpack.c.l.b16 %v730
        %v802 = vunpack.c.l.b16 %v731
        %v803 = vunpack.c.l.b16 %v732
        %v804 = vunpack.c.l.b16 %v733
        %v805 = vunpack.c.l.b16 %v734
        %v806 = vunpack.c.l.b16 %v735
        %v807 = vunpack.c.l.b16 %v736
        %v808 = vunpack.c.l.b16 %v737
        %v809 = vunpack.c.l.b16 %v738
        %v810 = vunpack.c.l.b16 %v739
        %v811 = vunpack.c.l.b16 %v740
        %v812 = vunpack.c.l.b16 %v741
        %v813 = vunpack.c.l.b16 %v742
        %v814 = vunpack.c.l.b16 %v743
        %v815 = vunpack.c.l.b16 %v744
        %v816 = vunpack.c.l.b16 %v745
        %v817 = vunpack.c.l.b16 %v746
        %v818 = vunpack.c.l.b16 %v747
        %v819 = vunpack.c.l.b16 %v748
        %v820 = vunpack.c.l.b16 %v749
        %v821 = vunpack.c.l.b16 %v750
        %v822 = vunpack.c.l.b16 %v751
        %v823 = vunpack.c.l.b16 %v752
        %v824 = vunpack.c.l.b16 %v753
        %v825 = vunpack.c.l.b16 %v754
        %v826 = vunpack.c.l.b16 %v755
        %v827 = vunpack.c.l.b16 %v756
        %v828 = vunpack.c.l.b16 %v757
        %v829 = vunpack.c.l.b16 %v758
        %v830 = vunpack.c.l.b16 %v759
        %v831 = vunpack.c.l.b16 %v760
        %v832 = vunpack.c.l.b16 %v761
        %v833 = vpack.c.b16 %v802, %v801
        %v834 = vpack.c.b16 %v804, %v803
        %v835 = vpack.c.b16 %v806, %v805
        %v836 = vpack.c.b16 %v808, %v807
        %v837 = vpack.c.b16 %v810, %v809
        %v838 = vpack.c.b16 %v812, %v811
        %v839 = vpack.c.b16 %v814, %v813
        %v840 = vpack.c.b16 %v816, %v815
        %v841 = vpack.c.b16 %v818, %v817
        %v842 = vpack.c.b16 %v820, %v819
        %v843 = vpack.c.b16 %v822, %v821
        %v844 = vpack.c.b16 %v824, %v823
        %v845 = vpack.c.b16 %v826, %v825
        %v846 = vpack.c.b16 %v828, %v827
        %v847 = vpack.c.b16 %v830, %v829
        %v848 = vpack.c.b16 %v832, %v831
        %865 = vmatprep.subr.bf16.mxu0 0
        %866 = vmatpush1.bf16.msra.mxu0 %v833
        %867 = vmatprep.subr.bf16.mxu0 0
        %868 = vmatpush1.bf16.msra.mxu0 %v834
        %869 = vmatprep.subr.bf16.mxu0 0
        %870 = vmatpush1.bf16.msra.mxu0 %v835
        %871 = vmatprep.subr.bf16.mxu0 0
        %872 = vmatpush1.bf16.msra.mxu0 %v836
        %873 = vmatprep.subr.bf16.mxu0 0
        %874 = vmatpush1.bf16.msra.mxu0 %v837
        %875 = vmatprep.subr.bf16.mxu0 0
        %876 = vmatpush1.bf16.msra.mxu0 %v838
        %877 = vmatprep.subr.bf16.mxu0 0
        %878 = vmatpush1.bf16.msra.mxu0 %v839
        %879 = vmatprep.subr.bf16.mxu0 0
        %880 = vmatpush1.bf16.msra.mxu0 %v840
        %881 = vmatprep.subr.bf16.mxu0 0
        %882 = vmatpush1.bf16.msra.mxu0 %v841
        %883 = vmatprep.subr.bf16.mxu0 0
        %884 = vmatpush1.bf16.msra.mxu0 %v842
        %885 = vmatprep.subr.bf16.mxu0 0
        %886 = vmatpush1.bf16.msra.mxu0 %v843
        %887 = vmatprep.subr.bf16.mxu0 0
        %888 = vmatpush1.bf16.msra.mxu0 %v844
        %889 = vmatprep.subr.bf16.mxu0 0
        %890 = vmatpush1.bf16.msra.mxu0 %v845
        %891 = vmatprep.subr.bf16.mxu0 0
        %892 = vmatpush1.bf16.msra.mxu0 %v846
        %893 = vmatprep.subr.bf16.mxu0 0
        %894 = vmatpush1.bf16.msra.mxu0 %v847
        %895 = vmatprep.subr.bf16.mxu0 0
        %896 = vmatpush1.bf16.msra.mxu0 %v848
        %897 = vmatprep.mubr.bf16.mxu0 %v723
        %898 = vmatmul.mubr.bf16.gmra.mrb[0].mxu0 %v722
        %v899 = vpop.f32.mrb[0].mxu0
        %v900 = vadd.f32 %v767, %v899
        %v901 = vpop.f32.mrb[0].mxu0
        %v902 = vpop.f32.mrb[0].mxu0
        %v903 = vadd.f32 %v767, %v902
        %v904 = vpop.f32.mrb[0].mxu0
        %905 = vmatprep.mubr.bf16.mxu0 %v725
        %906 = vmatmul.mubr.bf16.gmra.mrb[0].mxu0 %v724
        %v907 = vpop.f32.mrb[0].mxu0
        %v908 = vadd.f32 %v767, %v907
        %v909 = vpop.f32.mrb[0].mxu0
        %v910 = vpop.f32.mrb[0].mxu0
        %v911 = vadd.f32 %v767, %v910
        %v912 = vpop.f32.mrb[0].mxu0
        %913 = vmatprep.mubr.bf16.mxu0 %v727
        %914 = vmatmul.mubr.bf16.gmra.mrb[0].mxu0 %v726
        %v915 = vpop.f32.mrb[0].mxu0
        %v916 = vadd.f32 %v767, %v915
        %v917 = vpop.f32.mrb[0].mxu0
        %v918 = vpop.f32.mrb[0].mxu0
        %v919 = vadd.f32 %v767, %v918
        %v920 = vpop.f32.mrb[0].mxu0
        %921 = vmatprep.mubr.bf16.mxu0 %v729
        %922 = vmatmul.mubr.bf16.gmra.mrb[0].mxu0 %v728
        %v923 = vpop.f32.mrb[0].mxu0
        %v924 = vadd.f32 %v767, %v923
        %v925 = vpop.f32.mrb[0].mxu0
        %v926 = vpop.f32.mrb[0].mxu0
        %v927 = vadd.f32 %v767, %v926
        %v928 = vpop.f32.mrb[0].mxu0
        %929 = vdwg.mxu0
        %930 = vst [vmem:[%s325] sm:$0xff] %v900
        %931 = vst [vmem:[%s325 + $0x8] sm:$0xff] %v903
        %932 = vst [vmem:[%s325 + $0x10] sm:$0xff] %v908
        %933 = vst [vmem:[%s325 + $0x18] sm:$0xff] %v911
        %934 = vst [vmem:[%s325 + $0x20] sm:$0xff] %v916
        %935 = vst [vmem:[%s325 + $0x28] sm:$0xff] %v919
        %936 = vst [vmem:[%s325 + $0x30] sm:$0xff] %v924
        %937 = vst [vmem:[%s325 + $0x38] sm:$0xff] %v927
        %s938 = sand.u32 %s185, 1
        %s939 = scalar_lea.sflag [#allocation4], %s938
        %s940 = sand.u32 %s185, 1
        %s941 = smul.addr %s940, 64
        %s942 = scalar_lea.vmem [#allocation8], %s941
        // Predicated region
        $region61: #{tpu_custom_call.1} parent=47 // pred_check
          %p943 = pneg %p195
        $region62: #{tpu_custom_call.1} parent=47 // pred_check_branch
          %945 = sbr.rel (%p943) target = $region64
        $region63: #{tpu_custom_call.1} parent=47 // pred_region
          %s946 = smul.u32 8, %s25
          %s948 = ssub.s32 1024, 1024
          %949 = vsyncadd %s939, %s948
          %s950 = smul.addr %s946, 128
          %s951 = scalar_lea.hbm %s7, %s950
          %s952 = sshll.u32 %s942, 4
          %s953 = int_to_ptr.vmem [resolvable:$true] %s952
          %958 = dma.vmem_to_hbm [thread:$0]  %s953, 1024, %s951, %s939, 128, 128, 8
        $region64: #{tpu_custom_call.1} parent=47 // pred_fallthru
          _
      $region48: #{tpu_custom_call.1} parent=5 // pred_fallthru
        _
      %p959 = scmp.le.s32.totalorder 2, %s20
      // Predicated region
      $region65: #{tpu_custom_call.1} parent=5 // pred_check
        %p960 = pneg %p959
      $region66: #{tpu_custom_call.1} parent=5 // pred_check_branch
        %962 = sbr.rel (%p960) target = $region68
      $region67: #{tpu_custom_call.1} parent=5 // pred_region
        %s963 = ssub.s32 %s20, 2
        // Predicated region
        $region69: #{tpu_custom_call.1} parent=67 // pred_check
          %p964 = pneg %p201
        $region70: #{tpu_custom_call.1} parent=67 // pred_check_branch
          %966 = sbr.rel (%p964) target = $region72
        $region71: #{tpu_custom_call.1} parent=67 // pred_region
          %s967 = sand.u32 %s186, 1
          %s968 = scalar_lea.sflag [#allocation4], %s967
          %s969 = sand.u32 %s186, 1
          %s970 = smul.addr %s969, 64
          %s971 = scalar_lea.vmem [#allocation8], %s970
          %972 = dma.done %s968, 1024
        $region72: #{tpu_custom_call.1} parent=67 // pred_fallthru
          _
      $region68: #{tpu_custom_call.1} parent=5 // pred_fallthru
        _
    $region6: #{tpu_custom_call.1} parent=1 // loop_footer
      %s24 = sadd.s32 1, %s20
    $region7: #{tpu_custom_call.1} parent=1 // loop_footer_branch
      %19 = sbr.rel target = $region3
    $region8: #{tpu_custom_call.1} parent=1 // loop_exit
      _
    %973 = vsyncpa [#allocation3], 1
    %s974 = scalar_lea.sflag [#allocation3], 1
    %975 = vsyncpa %s974, 1
    %976 = vsyncpa [#allocation6], 1
    %977 = vsyncpa [#allocation4], 1
    %s978 = scalar_lea.sflag [#allocation4], 1
    %979 = vsyncpa %s978, 1

</llo_original>
